<compile_context>
chip_gen: v7x
topology: tpu7x:2x2x1
jax: 0.10.0
libtpu: 0.0.40
codegen_flags: <defaults>
</compile_context>

<pallas_src>
import functools
import math

import jax
import jax.numpy as jnp
from jax.experimental import pallas as pl
from jax.experimental.pallas import tpu as pltpu

_LANE = 128   # lane width: feature dims padded to multiples of this
_SUBLANE = 8  # f32 sublane: batch tile must be a multiple of this


def _round_up(x, m):
    return ((x + m - 1) // m) * m


def _mlp_fused_kernel(*refs, activations, compute_dtype):
    """Fused MLP forward for one batch tile.

    refs = (x_ref, w0, b0, w1, b1, ..., wN, bN, o_ref).
    Intermediates stay on-chip; weights/biases are grid-resident.
    """
    x_ref = refs[0]
    o_ref = refs[-1]
    params = refs[1:-1]
    n_layers = len(params) // 2

    h = x_ref[...].astype(jnp.float32)
    for l in range(n_layers):
        w = params[2 * l][...]
        b = params[2 * l + 1][...]
        # bf16 operands on the MXU, f32 accumulation.
        y = jnp.dot(h.astype(compute_dtype), w.astype(compute_dtype),
                    preferred_element_type=jnp.float32)
        y = y + b.astype(jnp.float32)          # (tile_b, N) + (1, N) broadcast
        act = activations[l]
        if act == "relu":
            y = jnp.maximum(y, 0.0)
        elif act == "sigmoid":
            y = jax.nn.sigmoid(y)              # f32 post-ops (v5e friendly)
        h = y
    o_ref[...] = h.astype(o_ref.dtype)


def mlp_forward_fused(x, params, activations, *, tile_b=512,
                      compute_dtype=jnp.bfloat16):
    """Run the fused MLP kernel.

    x:       (batch, D0_pad) f32, feature dim already padded to 128.
    params:  list of (w, b) with w: (Din_pad, Dout_pad), b: (1, Dout_pad),
             all padded dims multiples of 128, padding filled with zeros.
    """
    batch, d_in = x.shape
    d_out = params[-1][0].shape[1]

    # Batch tile: multiple of 8, capped at 512 (sized so double-buffered
    # in/out tiles + resident weights fit comfortably in v7x's 64 MiB VMEM).
    tile_b = max(_SUBLANE, min(tile_b, _round_up(max(batch, 1), _SUBLANE)))
    padded_b = _round_up(batch, tile_b)
    if padded_b != batch:
        x = jnp.pad(x, ((0, padded_b - batch), (0, 0)))
    num_tiles = padded_b // tile_b

    flat_params = []
    in_specs = [pl.BlockSpec((tile_b, d_in), lambda i: (i, 0))]
    for (w, b) in params:
        flat_params.append(w)
        flat_params.append(b)
        # Full-array blocks with constant index_map -> resident across grid.
        in_specs.append(pl.BlockSpec(w.shape, lambda i: (0, 0)))
        in_specs.append(pl.BlockSpec(b.shape, lambda i: (0, 0)))

    flops = 2 * padded_b * sum(w.shape[0] * w.shape[1] for (w, _) in params)
    transcendentals = padded_b * sum(
        w.shape[1] for (w, _), a in zip(params, activations) if a == "sigmoid")
    bytes_accessed = (
        x.size * x.dtype.itemsize
        + padded_b * d_out * 4
        + sum(w.size * w.dtype.itemsize + b.size * b.dtype.itemsize
              for (w, b) in params))

    kernel = functools.partial(
        _mlp_fused_kernel,
        activations=tuple(activations),
        compute_dtype=compute_dtype,
    )

    out = pl.pallas_call(
        kernel,
        out_shape=jax.ShapeDtypeStruct((padded_b, d_out), jnp.float32),
        grid=(num_tiles,),
        in_specs=in_specs,
        out_specs=pl.BlockSpec((tile_b, d_out), lambda i: (i, 0)),
        compiler_params=pltpu.CompilerParams(
            dimension_semantics=("parallel",),     # shard batch across TCs (v7x)
            vmem_limit_bytes=32 * 1024 * 1024,     # explicit, safe on all gens
        ),
        cost_estimate=pl.CostEstimate(
            flops=int(flops),
            transcendentals=int(transcendentals),
            bytes_accessed=int(bytes_accessed),
        ),
    )(x, *flat_params)
    return out[:batch]


class NNPallas:
    """JAX/Pallas equivalent of the PyTorch NN module's forward pass."""

    def __init__(self, layer_sizes, activation_functions=None, key=None,
                 compute_dtype=jnp.bfloat16, tile_b=512):
        self.layer_sizes = list(layer_sizes)
        self.depth = len(self.layer_sizes)
        n_layers = self.depth - 1
        if activation_functions is None:
            activation_functions = [None] * n_layers

        # Activation only BETWEEN layers (never after the last Linear),
        # matching the PyTorch module's construction.  Robust to a short list.
        self.activations = []
        for i in range(n_layers):
            act = None
            if i != n_layers - 1 and i < len(activation_functions):
                if activation_functions[i] in ("relu", "sigmoid"):
                    act = activation_functions[i]
            self.activations.append(act)

        self.compute_dtype = compute_dtype
        self.tile_b = tile_b

        if key is None:
            key = jax.random.PRNGKey(0)

        # Feature dims zero-padded to 128 lanes: padded rows/cols of W and b
        # are zero so results are unchanged, but MXU tiles are full and
        # stores are unmasked.
        self.padded_sizes = [_round_up(s, _LANE) for s in self.layer_sizes]

        # Deterministic init matching nn.Linear's default:
        # U(-1/sqrt(fan_in), 1/sqrt(fan_in)) for weight and bias
        # (weight stored as (in, out) = transpose of PyTorch's (out, in)).
        self.params = []
        for i in range(n_layers):
            fan_in, fan_out = self.layer_sizes[i], self.layer_sizes[i + 1]
            pad_in, pad_out = self.padded_sizes[i], self.padded_sizes[i + 1]
            key, wkey, bkey = jax.random.split(key, 3)
            bound = 1.0 / math.sqrt(fan_in)
            w = jax.random.uniform(wkey, (fan_in, fan_out), jnp.float32,
                                   -bound, bound)
            b = jax.random.uniform(bkey, (1, fan_out), jnp.float32,
                                   -bound, bound)
            w = jnp.pad(w, ((0, pad_in - fan_in), (0, pad_out - fan_out)))
            b = jnp.pad(b, ((0, 0), (0, pad_out - fan_out)))
            self.params.append((w, b))

    def forward(self, x):
        batch, d_in = x.shape
        assert d_in == self.layer_sizes[0]
        x = x.astype(jnp.float32)
        if self.padded_sizes[0] != d_in:
            x = jnp.pad(x, ((0, 0), (0, self.padded_sizes[0] - d_in)))
        out = mlp_forward_fused(
            x, self.params, self.activations,
            tile_b=self.tile_b, compute_dtype=self.compute_dtype)
        return out[:, :self.layer_sizes[-1]]

    def reference_forward(self, x, match_compute_dtype=True):
        """Pure-JAX reference.  match_compute_dtype=True mimics the kernel's
        bf16 MXU operands (f32 accumulation); False is a pure f32 reference."""
        h = x.astype(jnp.float32)
        d_in = self.layer_sizes[0]
        if self.padded_sizes[0] != d_in:
            h = jnp.pad(h, ((0, 0), (0, self.padded_sizes[0] - d_in)))
        for (w, b), act in zip(self.params, self.activations):
            if match_compute_dtype:
                y = jnp.dot(h.astype(self.compute_dtype),
                            w.astype(self.compute_dtype),
                            preferred_element_type=jnp.float32)
            else:
                y = jnp.dot(h, w, preferred_element_type=jnp.float32)
            y = y + b
            if act == "relu":
                y = jnp.maximum(y, 0.0)
            elif act == "sigmoid":
                y = jax.nn.sigmoid(y)
            h = y
        return h[:, :self.layer_sizes[-1]]


if __name__ == "__main__":
    key = jax.random.PRNGKey(0)
    key, xkey, pkey = jax.random.split(key, 3)

    # Small MLP: 32 -> 64 -> 48 -> 16, relu then sigmoid between layers.
    layer_sizes = [32, 64, 48, 16]
    activations = ["relu", "sigmoid", None]
    batch = 8

    nn_model = NNPallas(layer_sizes, activations, key=pkey)
    x = jax.random.normal(xkey, (batch, layer_sizes[0]), jnp.float32)

    out = nn_model.forward(x)
    out = jax.block_until_ready(out)
    assert out.shape == (batch, layer_sizes[-1])

    # Exact-semantics check against a JAX reference using the same bf16
    # MXU operands / f32 accumulation.
    ref_bf16 = nn_model.reference_forward(x, match_compute_dtype=True)
    assert jnp.allclose(out, ref_bf16, atol=1e-3, rtol=1e-3), (
        jnp.max(jnp.abs(out - ref_bf16)))

    # Sanity check against the pure-f32 reference (loose tolerance for bf16).
    ref_f32 = nn_model.reference_forward(x, match_compute_dtype=False)
    assert jnp.allclose(out, ref_f32, atol=5e-2, rtol=5e-2), (
        jnp.max(jnp.abs(out - ref_f32)))

    print("KERNEL_OK")
</pallas_src>

<mosaic_0001>
module attributes {stable_mosaic.version = 11 : i64} {
  func.func @_mlp_fused_kernel(%arg0: i32, %arg1: memref<8x128xf32, #tpu.memory_space<vmem>>, %arg2: memref<128x128xf32, #tpu.memory_space<vmem>>, %arg3: memref<1x128xf32, #tpu.memory_space<vmem>>, %arg4: memref<128x128xf32, #tpu.memory_space<vmem>>, %arg5: memref<1x128xf32, #tpu.memory_space<vmem>>, %arg6: memref<128x128xf32, #tpu.memory_space<vmem>>, %arg7: memref<1x128xf32, #tpu.memory_space<vmem>>, %arg8: memref<8x128xf32, #tpu.memory_space<vmem>>) attributes {dimension_semantics = [#tpu.dimension_semantics<parallel>], iteration_bounds = array<i64: 1>, scalar_prefetch = 0 : i64, scratch_operands = 0 : i64, tpu.core_type = #tpu.core_type<tc>, window_params = [{transform_indices = @transform_0, window_bounds = array<i64: 8, 128>}, {pipeline_mode = #tpu.pipeline_mode<synchronous>, transform_indices = @transform_1, window_bounds = array<i64: 128, 128>}, {pipeline_mode = #tpu.pipeline_mode<synchronous>, transform_indices = @transform_2, window_bounds = array<i64: 1, 128>}, {pipeline_mode = #tpu.pipeline_mode<synchronous>, transform_indices = @transform_3, window_bounds = array<i64: 128, 128>}, {pipeline_mode = #tpu.pipeline_mode<synchronous>, transform_indices = @transform_4, window_bounds = array<i64: 1, 128>}, {pipeline_mode = #tpu.pipeline_mode<synchronous>, transform_indices = @transform_5, window_bounds = array<i64: 128, 128>}, {pipeline_mode = #tpu.pipeline_mode<synchronous>, transform_indices = @transform_6, window_bounds = array<i64: 1, 128>}, {transform_indices = @transform_7, window_bounds = array<i64: 8, 128>}]} {
    %c0 = arith.constant 0 : index
    %c0_0 = arith.constant 0 : index
    %0 = vector.load %arg1[%c0, %c0_0] : memref<8x128xf32, #tpu.memory_space<vmem>>, vector<8x128xf32>
    %c0_1 = arith.constant 0 : index
    %c0_2 = arith.constant 0 : index
    %1 = vector.load %arg2[%c0_1, %c0_2] : memref<128x128xf32, #tpu.memory_space<vmem>>, vector<128x128xf32>
    %c0_3 = arith.constant 0 : index
    %c0_4 = arith.constant 0 : index
    %2 = vector.load %arg3[%c0_3, %c0_4] : memref<1x128xf32, #tpu.memory_space<vmem>>, vector<1x128xf32>
    %3 = arith.truncf %0 : vector<8x128xf32> to vector<8x128xbf16>
    %4 = arith.truncf %1 : vector<128x128xf32> to vector<128x128xbf16>
    %cst = arith.constant dense<0.000000e+00> : vector<8x128xf32>
    %5 = tpu.matmul %3, %4, %cst {dimension_numbers = #tpu.dot_dimension_numbers<[1], [0], [0], [1], [0, 0, 1, 1], [], []>} : vector<8x128xbf16>, vector<128x128xbf16>, vector<8x128xf32> -> vector<8x128xf32>
    %6 = vector.broadcast %2 : vector<1x128xf32> to vector<8x128xf32>
    %7 = arith.addf %5, %6 : vector<8x128xf32>
    %cst_5 = arith.constant 0.000000e+00 : f32
    %8 = vector.broadcast %cst_5 : f32 to vector<8x128xf32>
    %9 = arith.maximumf %7, %8 : vector<8x128xf32>
    %c0_6 = arith.constant 0 : index
    %c0_7 = arith.constant 0 : index
    %10 = vector.load %arg4[%c0_6, %c0_7] : memref<128x128xf32, #tpu.memory_space<vmem>>, vector<128x128xf32>
    %c0_8 = arith.constant 0 : index
    %c0_9 = arith.constant 0 : index
    %11 = vector.load %arg5[%c0_8, %c0_9] : memref<1x128xf32, #tpu.memory_space<vmem>>, vector<1x128xf32>
    %12 = arith.truncf %9 : vector<8x128xf32> to vector<8x128xbf16>
    %13 = arith.truncf %10 : vector<128x128xf32> to vector<128x128xbf16>
    %cst_10 = arith.constant dense<0.000000e+00> : vector<8x128xf32>
    %14 = tpu.matmul %12, %13, %cst_10 {dimension_numbers = #tpu.dot_dimension_numbers<[1], [0], [0], [1], [0, 0, 1, 1], [], []>} : vector<8x128xbf16>, vector<128x128xbf16>, vector<8x128xf32> -> vector<8x128xf32>
    %15 = vector.broadcast %11 : vector<1x128xf32> to vector<8x128xf32>
    %16 = arith.addf %14, %15 : vector<8x128xf32>
    %17 = arith.negf %16 : vector<8x128xf32>
    %18 = math.exp %17 : vector<8x128xf32>
    %cst_11 = arith.constant 1.000000e+00 : f32
    %19 = vector.broadcast %cst_11 : f32 to vector<8x128xf32>
    %20 = arith.addf %19, %18 : vector<8x128xf32>
    %21 = arith.divf %19, %20 : vector<8x128xf32>
    %c0_12 = arith.constant 0 : index
    %c0_13 = arith.constant 0 : index
    %22 = vector.load %arg6[%c0_12, %c0_13] : memref<128x128xf32, #tpu.memory_space<vmem>>, vector<128x128xf32>
    %c0_14 = arith.constant 0 : index
    %c0_15 = arith.constant 0 : index
    %23 = vector.load %arg7[%c0_14, %c0_15] : memref<1x128xf32, #tpu.memory_space<vmem>>, vector<1x128xf32>
    %24 = arith.truncf %21 : vector<8x128xf32> to vector<8x128xbf16>
    %25 = arith.truncf %22 : vector<128x128xf32> to vector<128x128xbf16>
    %cst_16 = arith.constant dense<0.000000e+00> : vector<8x128xf32>
    %26 = tpu.matmul %24, %25, %cst_16 {dimension_numbers = #tpu.dot_dimension_numbers<[1], [0], [0], [1], [0, 0, 1, 1], [], []>} : vector<8x128xbf16>, vector<128x128xbf16>, vector<8x128xf32> -> vector<8x128xf32>
    %27 = vector.broadcast %23 : vector<1x128xf32> to vector<8x128xf32>
    %28 = arith.addf %26, %27 : vector<8x128xf32>
    %c0_17 = arith.constant 0 : index
    %c0_18 = arith.constant 0 : index
    %29 = vector.load %arg8[%c0_17, %c0_18] : memref<8x128xf32, #tpu.memory_space<vmem>>, vector<8x128xf32>
    tpu.vector_store %arg8[%c0_17, %c0_18], %28 {strides = array<i32>} : memref<8x128xf32, #tpu.memory_space<vmem>>, vector<8x128xf32>,
    return
  }
  func.func @transform_0(%arg0: i32) -> (i32, i32) {
    %c0_i32 = arith.constant 0 : i32
    %c0_i32_0 = arith.constant 0 : i32
    return %arg0, %c0_i32 : i32, i32
  }
  func.func @transform_1(%arg0: i32) -> (i32, i32) {
    %c0_i32 = arith.constant 0 : i32
    %c0_i32_0 = arith.constant 0 : i32
    %c0_i32_1 = arith.constant 0 : i32
    return %c0_i32, %c0_i32_0 : i32, i32
  }
  func.func @transform_2(%arg0: i32) -> (i32, i32) {
    %c0_i32 = arith.constant 0 : i32
    %c0_i32_0 = arith.constant 0 : i32
    %c0_i32_1 = arith.constant 0 : i32
    return %c0_i32, %c0_i32_0 : i32, i32
  }
  func.func @transform_3(%arg0: i32) -> (i32, i32) {
    %c0_i32 = arith.constant 0 : i32
    %c0_i32_0 = arith.constant 0 : i32
    %c0_i32_1 = arith.constant 0 : i32
    return %c0_i32, %c0_i32_0 : i32, i32
  }
  func.func @transform_4(%arg0: i32) -> (i32, i32) {
    %c0_i32 = arith.constant 0 : i32
    %c0_i32_0 = arith.constant 0 : i32
    %c0_i32_1 = arith.constant 0 : i32
    return %c0_i32, %c0_i32_0 : i32, i32
  }
  func.func @transform_5(%arg0: i32) -> (i32, i32) {
    %c0_i32 = arith.constant 0 : i32
    %c0_i32_0 = arith.constant 0 : i32
    %c0_i32_1 = arith.constant 0 : i32
    return %c0_i32, %c0_i32_0 : i32, i32
  }
  func.func @transform_6(%arg0: i32) -> (i32, i32) {
    %c0_i32 = arith.constant 0 : i32
    %c0_i32_0 = arith.constant 0 : i32
    %c0_i32_1 = arith.constant 0 : i32
    return %c0_i32, %c0_i32_0 : i32, i32
  }
  func.func @transform_7(%arg0: i32) -> (i32, i32) {
    %c0_i32 = arith.constant 0 : i32
    %c0_i32_0 = arith.constant 0 : i32
    return %arg0, %c0_i32 : i32, i32
  }
}

</mosaic_0001>

<llo_original>
// kernel: tpu_custom_call.1
$region0: #{tpu_custom_call.1}
  #allocation0 [shape = 'u32[]', space=smem, size = 0x4, offset = 0x4, fixed_abs, tag = 'smem constant byte address 0x4 - core index']
  #allocation1 [shape = 'u32[144,128]{1,0:T(1,128)}', space=vmem, size = 0x12000, scoped, tag = 'internal scratch']
  %s0 = inlined_call_operand.hbm [shape: f32[8,128], index: 0, kind: input, shape index: {}]
  %s1 = inlined_call_operand.hbm [shape: f32[128,128], index: 1, kind: input, shape index: {}]
  %s2 = inlined_call_operand.vmem [shape: f32[1,128], index: 2, kind: input, shape index: {}]
  %s3 = inlined_call_operand.hbm [shape: f32[128,128], index: 3, kind: input, shape index: {}]
  %s4 = inlined_call_operand.vmem [shape: f32[1,128], index: 4, kind: input, shape index: {}]
  %s5 = inlined_call_operand.hbm [shape: f32[128,128], index: 5, kind: input, shape index: {}]
  %s6 = inlined_call_operand.vmem [shape: f32[1,128], index: 6, kind: input, shape index: {}]
  %s7 = inlined_call_operand.hbm [shape: f32[8,128], index: 7, kind: output, shape index: {}]
  %s8 = sld [smem:[#allocation0]]
  $region54: #{tpu_custom_call.1} parent=0
    _
  %s10 = ssub.s32 1, %s8
  %s11 = scalar_select 0, %s10, %s8
  $region1: #{tpu_custom_call.1} parent=0
    #allocation2 [shape = 'u8[4096]{0}', space=vmem, size = 0x1000, scoped, tag = 'input window, operand 0, single buffered']
    #allocation3 [shape = 's32[1]{0}', space=sflag, size = 0x4, scoped, tag = 'scoped memory for tpu_custom_call.1']
    #allocation4 [shape = 's32[1]{0}', space=sflag, size = 0x4, scoped, tag = 'scoped memory for tpu_custom_call.1']
    #allocation5 [shape = 'u8[65536]{0}', space=vmem, size = 0x10000, scoped, tag = 'input window, operand 1, single buffered']
    #allocation6 [shape = 's32[1]{0}', space=sflag, size = 0x4, scoped, tag = 'scoped memory for tpu_custom_call.1']
    #allocation7 [shape = 'u8[65536]{0}', space=vmem, size = 0x10000, scoped, tag = 'input window, operand 3, single buffered']
    #allocation8 [shape = 'u8[65536]{0}', space=vmem, size = 0x10000, scoped, tag = 'input window, operand 5, single buffered']
    #allocation9 [shape = 's32[1]{0}', space=sflag, size = 0x4, scoped, tag = 'scoped memory for tpu_custom_call.1']
    #allocation10 [shape = 'u8[4096]{0}', space=vmem, size = 0x1000, scoped, tag = 'output window, operand 0, single buffered']
    %12 = vsyncpa [#allocation3], 0
    %13 = vsyncpa [#allocation6], 0
    %14 = vsyncpa [#allocation9], 0
    %15 = vsyncpa [#allocation4], 0
    // Predicated region
    $region2: #{tpu_custom_call.1} parent=1 // pred_check
      _
    $region3: #{tpu_custom_call.1} parent=1 // pred_check_branch
      %17 = sbr.rel (0) target = $region5
    $region4: #{tpu_custom_call.1} parent=1 // pred_region
      %s19 = ssub.s32 128, 128
      %20 = vsyncadd [#allocation3], %s19
      %s22 = sshll.u32 [#allocation2], 4
      %s23 = int_to_ptr.vmem [resolvable:$true] %s22
      %25 = dma.hbm_to_vmem [thread:$0]  %s0, 128, %s23, [#allocation3]
    $region5: #{tpu_custom_call.1} parent=1 // pred_fallthru
      _
    // Predicated region
    $region6: #{tpu_custom_call.1} parent=1 // pred_check
      _
    $region7: #{tpu_custom_call.1} parent=1 // pred_check_branch
      %27 = sbr.rel (0) target = $region9
    $region8: #{tpu_custom_call.1} parent=1 // pred_region
      %s29 = ssub.s32 2048, 2048
      %30 = vsyncadd [#allocation6], %s29
      %s31 = sshll.u32 [#allocation5], 4
      %s32 = int_to_ptr.vmem [resolvable:$true] %s31
      %37 = dma.hbm_to_vmem [thread:$0]  %s1, 2048, %s32, [#allocation6], 128, 128, 8
    $region9: #{tpu_custom_call.1} parent=1 // pred_fallthru
      _
    // Predicated region
    $region10: #{tpu_custom_call.1} parent=1 // pred_check
      _
    $region11: #{tpu_custom_call.1} parent=1 // pred_check_branch
      %39 = sbr.rel (0) target = $region13
    $region12: #{tpu_custom_call.1} parent=1 // pred_region
      _
    $region13: #{tpu_custom_call.1} parent=1 // pred_fallthru
      _
    // Predicated region
    $region14: #{tpu_custom_call.1} parent=1 // pred_check
      _
    $region15: #{tpu_custom_call.1} parent=1 // pred_check_branch
      %41 = sbr.rel (0) target = $region17
    $region16: #{tpu_custom_call.1} parent=1 // pred_region
      %s43 = ssub.s32 2048, 2048
      %44 = vsyncadd [#allocation6], %s43
      %s45 = sshll.u32 [#allocation7], 4
      %s46 = int_to_ptr.vmem [resolvable:$true] %s45
      %51 = dma.hbm_to_vmem [thread:$0]  %s3, 2048, %s46, [#allocation6], 128, 128, 8
    $region17: #{tpu_custom_call.1} parent=1 // pred_fallthru
      _
    // Predicated region
    $region18: #{tpu_custom_call.1} parent=1 // pred_check
      _
    $region19: #{tpu_custom_call.1} parent=1 // pred_check_branch
      %53 = sbr.rel (0) target = $region21
    $region20: #{tpu_custom_call.1} parent=1 // pred_region
      _
    $region21: #{tpu_custom_call.1} parent=1 // pred_fallthru
      _
    // Predicated region
    $region22: #{tpu_custom_call.1} parent=1 // pred_check
      _
    $region23: #{tpu_custom_call.1} parent=1 // pred_check_branch
      %55 = sbr.rel (0) target = $region25
    $region24: #{tpu_custom_call.1} parent=1 // pred_region
      %s57 = ssub.s32 2048, 2048
      %58 = vsyncadd [#allocation9], %s57
      %s59 = sshll.u32 [#allocation8], 4
      %s60 = int_to_ptr.vmem [resolvable:$true] %s59
      %65 = dma.hbm_to_vmem [thread:$0]  %s5, 2048, %s60, [#allocation9], 128, 128, 8
    $region25: #{tpu_custom_call.1} parent=1 // pred_fallthru
      _
    // Predicated region
    $region26: #{tpu_custom_call.1} parent=1 // pred_check
      _
    $region27: #{tpu_custom_call.1} parent=1 // pred_check_branch
      %67 = sbr.rel (0) target = $region29
    $region28: #{tpu_custom_call.1} parent=1 // pred_region
      _
    $region29: #{tpu_custom_call.1} parent=1 // pred_fallthru
      _
    // Predicated region
    $region30: #{tpu_custom_call.1} parent=1 // pred_check
      _
    $region31: #{tpu_custom_call.1} parent=1 // pred_check_branch
      %69 = sbr.rel (0) target = $region33
    $region32: #{tpu_custom_call.1} parent=1 // pred_region
      %70 = dma.done [#allocation3], 128
    $region33: #{tpu_custom_call.1} parent=1 // pred_fallthru
      _
    // Predicated region
    $region34: #{tpu_custom_call.1} parent=1 // pred_check
      _
    $region35: #{tpu_custom_call.1} parent=1 // pred_check_branch
      %72 = sbr.rel (0) target = $region37
    $region36: #{tpu_custom_call.1} parent=1 // pred_region
      %73 = dma.done [#allocation6], 2048
    $region37: #{tpu_custom_call.1} parent=1 // pred_fallthru
      _
    // Predicated region
    $region38: #{tpu_custom_call.1} parent=1 // pred_check
      _
    $region39: #{tpu_custom_call.1} parent=1 // pred_check_branch
      %75 = sbr.rel (0) target = $region41
    $region40: #{tpu_custom_call.1} parent=1 // pred_region
      %76 = dma.done [#allocation6], 2048
    $region41: #{tpu_custom_call.1} parent=1 // pred_fallthru
      _
    // Predicated region
    $region42: #{tpu_custom_call.1} parent=1 // pred_check
      _
    $region43: #{tpu_custom_call.1} parent=1 // pred_check_branch
      %78 = sbr.rel (0) target = $region45
    $region44: #{tpu_custom_call.1} parent=1 // pred_region
      %79 = dma.done [#allocation9], 2048
    $region45: #{tpu_custom_call.1} parent=1 // pred_fallthru
      _
    %v81 = vld [vmem:[#allocation2] sm:$0xff]
    %v82 = vld [vmem:[#allocation5] sm:$0xff]
    %v83 = vld [vmem:[#allocation5 + $0x8] sm:$0xff]
    %v84 = vld [vmem:[#allocation5 + $0x10] sm:$0xff]
    %v85 = vld [vmem:[#allocation5 + $0x18] sm:$0xff]
    %v86 = vld [vmem:[#allocation5 + $0x20] sm:$0xff]
    %v87 = vld [vmem:[#allocation5 + $0x28] sm:$0xff]
    %v88 = vld [vmem:[#allocation5 + $0x30] sm:$0xff]
    %v89 = vld [vmem:[#allocation5 + $0x38] sm:$0xff]
    %v90 = vld [vmem:[#allocation5 + $0x40] sm:$0xff]
    %v91 = vld [vmem:[#allocation5 + $0x48] sm:$0xff]
    %v92 = vld [vmem:[#allocation5 + $0x50] sm:$0xff]
    %v93 = vld [vmem:[#allocation5 + $0x58] sm:$0xff]
    %v94 = vld [vmem:[#allocation5 + $0x60] sm:$0xff]
    %v95 = vld [vmem:[#allocation5 + $0x68] sm:$0xff]
    %v96 = vld [vmem:[#allocation5 + $0x70] sm:$0xff]
    %v97 = vld [vmem:[#allocation5 + $0x78] sm:$0xff]
    %v98 = vld [vmem:[%s2] sm:$0x1]
    %v99 = vpack.c.bf16 %v81, %v81
    %v100 = vpack.c.bf16 %v83, %v82
    %v101 = vpack.c.bf16 %v85, %v84
    %v102 = vpack.c.bf16 %v87, %v86
    %v103 = vpack.c.bf16 %v89, %v88
    %v104 = vpack.c.bf16 %v91, %v90
    %v105 = vpack.c.bf16 %v93, %v92
    %v106 = vpack.c.bf16 %v95, %v94
    %v107 = vpack.c.bf16 %v97, %v96
    %v109 = vlaneseq
    %v110 = vshrl.u32 %v109, 7
    %v111 = vsub.s32 0, %v110
    %v112 = vrot.slane %v98, %v111
    %114 = vmatprep.subr.bf16.mxu0 0
    %115 = vmatpush1.bf16.msra.mxu0 %v100
    %116 = vmatprep.subr.bf16.mxu0 0
    %117 = vmatpush1.bf16.msra.mxu0 %v101
    %118 = vmatprep.subr.bf16.mxu0 0
    %119 = vmatpush1.bf16.msra.mxu0 %v102
    %120 = vmatprep.subr.bf16.mxu0 0
    %121 = vmatpush1.bf16.msra.mxu0 %v103
    %122 = vmatprep.subr.bf16.mxu0 0
    %123 = vmatpush1.bf16.msra.mxu0 %v104
    %124 = vmatprep.subr.bf16.mxu0 0
    %125 = vmatpush1.bf16.msra.mxu0 %v105
    %126 = vmatprep.subr.bf16.mxu0 0
    %127 = vmatpush1.bf16.msra.mxu0 %v106
    %128 = vmatprep.subr.bf16.mxu0 0
    %129 = vmatpush1.bf16.msra.mxu0 %v107
    %130 = vmatprep.subr.bf16.mxu0 0
    %131 = vmatpush1.bf16.msra.mxu0 0
    %132 = vmatprep.subr.bf16.mxu0 0
    %133 = vmatpush1.bf16.msra.mxu0 0
    %134 = vmatprep.subr.bf16.mxu0 0
    %135 = vmatpush1.bf16.msra.mxu0 0
    %136 = vmatprep.subr.bf16.mxu0 0
    %137 = vmatpush1.bf16.msra.mxu0 0
    %138 = vmatprep.subr.bf16.mxu0 0
    %139 = vmatpush1.bf16.msra.mxu0 0
    %140 = vmatprep.subr.bf16.mxu0 0
    %141 = vmatpush1.bf16.msra.mxu0 0
    %142 = vmatprep.subr.bf16.mxu0 0
    %143 = vmatpush1.bf16.msra.mxu0 0
    %144 = vmatprep.subr.bf16.mxu0 0
    %145 = vmatpush1.bf16.msra.mxu0 0
    %146 = vmatprep.mubr.bf16.mxu0 0
    %147 = vmatmul.mubr.bf16.gmra.mrb[0].mxu0 %v99
    %v148 = vpop.f32.mrb[0].mxu0
    %v149 = vadd.f32 %v112, %v148
    %v150 = vpop.f32.mrb[0].mxu0
    %v151 = vpop.f32.mrb[0].mxu0
    %v152 = vpop.f32.mrb[0].mxu0
    %153 = vdwg.mxu0
    %v154 = vmax.f32 %v149, 0.0
    %v155 = vld [vmem:[#allocation7] sm:$0xff]
    %v156 = vld [vmem:[#allocation7 + $0x8] sm:$0xff]
    %v157 = vld [vmem:[#allocation7 + $0x10] sm:$0xff]
    %v158 = vld [vmem:[#allocation7 + $0x18] sm:$0xff]
    %v159 = vld [vmem:[#allocation7 + $0x20] sm:$0xff]
    %v160 = vld [vmem:[#allocation7 + $0x28] sm:$0xff]
    %v161 = vld [vmem:[#allocation7 + $0x30] sm:$0xff]
    %v162 = vld [vmem:[#allocation7 + $0x38] sm:$0xff]
    %v163 = vld [vmem:[#allocation7 + $0x40] sm:$0xff]
    %v164 = vld [vmem:[#allocation7 + $0x48] sm:$0xff]
    %v165 = vld [vmem:[#allocation7 + $0x50] sm:$0xff]
    %v166 = vld [vmem:[#allocation7 + $0x58] sm:$0xff]
    %v167 = vld [vmem:[#allocation7 + $0x60] sm:$0xff]
    %v168 = vld [vmem:[#allocation7 + $0x68] sm:$0xff]
    %v169 = vld [vmem:[#allocation7 + $0x70] sm:$0xff]
    %v170 = vld [vmem:[#allocation7 + $0x78] sm:$0xff]
    %v171 = vld [vmem:[%s4] sm:$0x1]
    %v172 = vpack.c.bf16 %v154, %v154
    %v173 = vpack.c.bf16 %v156, %v155
    %v174 = vpack.c.bf16 %v158, %v157
    %v175 = vpack.c.bf16 %v160, %v159
    %v176 = vpack.c.bf16 %v162, %v161
    %v177 = vpack.c.bf16 %v164, %v163
    %v178 = vpack.c.bf16 %v166, %v165
    %v179 = vpack.c.bf16 %v168, %v167
    %v180 = vpack.c.bf16 %v170, %v169
    %v182 = vlaneseq
    %v183 = vshrl.u32 %v182, 7
    %v184 = vsub.s32 0, %v183
    %v185 = vrot.slane %v171, %v184
    %187 = vmatprep.subr.bf16.mxu0 0
    %188 = vmatpush1.bf16.msra.mxu0 %v173
    %189 = vmatprep.subr.bf16.mxu0 0
    %190 = vmatpush1.bf16.msra.mxu0 %v174
    %191 = vmatprep.subr.bf16.mxu0 0
    %192 = vmatpush1.bf16.msra.mxu0 %v175
    %193 = vmatprep.subr.bf16.mxu0 0
    %194 = vmatpush1.bf16.msra.mxu0 %v176
    %195 = vmatprep.subr.bf16.mxu0 0
    %196 = vmatpush1.bf16.msra.mxu0 %v177
    %197 = vmatprep.subr.bf16.mxu0 0
    %198 = vmatpush1.bf16.msra.mxu0 %v178
    %199 = vmatprep.subr.bf16.mxu0 0
    %200 = vmatpush1.bf16.msra.mxu0 %v179
    %201 = vmatprep.subr.bf16.mxu0 0
    %202 = vmatpush1.bf16.msra.mxu0 %v180
    %203 = vmatprep.subr.bf16.mxu0 0
    %204 = vmatpush1.bf16.msra.mxu0 0
    %205 = vmatprep.subr.bf16.mxu0 0
    %206 = vmatpush1.bf16.msra.mxu0 0
    %207 = vmatprep.subr.bf16.mxu0 0
    %208 = vmatpush1.bf16.msra.mxu0 0
    %209 = vmatprep.subr.bf16.mxu0 0
    %210 = vmatpush1.bf16.msra.mxu0 0
    %211 = vmatprep.subr.bf16.mxu0 0
    %212 = vmatpush1.bf16.msra.mxu0 0
    %213 = vmatprep.subr.bf16.mxu0 0
    %214 = vmatpush1.bf16.msra.mxu0 0
    %215 = vmatprep.subr.bf16.mxu0 0
    %216 = vmatpush1.bf16.msra.mxu0 0
    %217 = vmatprep.subr.bf16.mxu0 0
    %218 = vmatpush1.bf16.msra.mxu0 0
    %219 = vmatprep.mubr.bf16.mxu0 0
    %220 = vmatmul.mubr.bf16.gmra.mrb[0].mxu0 %v172
    %v221 = vpop.f32.mrb[0].mxu0
    %v222 = vadd.f32 %v185, %v221
    %v223 = vpop.f32.mrb[0].mxu0
    %v224 = vpop.f32.mrb[0].mxu0
    %v225 = vpop.f32.mrb[0].mxu0
    %226 = vdwg.mxu0
    %v227 = vxor.u32 %v222, 2147483648
    %v228 = vmul.f32 %v227, 1.442695
    %v229 = vpow.pop %v228
    %v230 = vadd.f32 %v229, 1.0
    %v231 = vrcp.pop %v230
    %v232 = vmul.f32 1.0, %v231
    %v233 = vld [vmem:[#allocation8] sm:$0xff]
    %v234 = vld [vmem:[#allocation8 + $0x8] sm:$0xff]
    %v235 = vld [vmem:[#allocation8 + $0x10] sm:$0xff]
    %v236 = vld [vmem:[#allocation8 + $0x18] sm:$0xff]
    %v237 = vld [vmem:[#allocation8 + $0x20] sm:$0xff]
    %v238 = vld [vmem:[#allocation8 + $0x28] sm:$0xff]
    %v239 = vld [vmem:[#allocation8 + $0x30] sm:$0xff]
    %v240 = vld [vmem:[#allocation8 + $0x38] sm:$0xff]
    %v241 = vld [vmem:[#allocation8 + $0x40] sm:$0xff]
    %v242 = vld [vmem:[#allocation8 + $0x48] sm:$0xff]
    %v243 = vld [vmem:[#allocation8 + $0x50] sm:$0xff]
    %v244 = vld [vmem:[#allocation8 + $0x58] sm:$0xff]
    %v245 = vld [vmem:[#allocation8 + $0x60] sm:$0xff]
    %v246 = vld [vmem:[#allocation8 + $0x68] sm:$0xff]
    %v247 = vld [vmem:[#allocation8 + $0x70] sm:$0xff]
    %v248 = vld [vmem:[#allocation8 + $0x78] sm:$0xff]
    %v249 = vld [vmem:[%s6] sm:$0x1]
    %v250 = vpack.c.bf16 %v232, %v232
    %v251 = vpack.c.bf16 %v234, %v233
    %v252 = vpack.c.bf16 %v236, %v235
    %v253 = vpack.c.bf16 %v238, %v237
    %v254 = vpack.c.bf16 %v240, %v239
    %v255 = vpack.c.bf16 %v242, %v241
    %v256 = vpack.c.bf16 %v244, %v243
    %v257 = vpack.c.bf16 %v246, %v245
    %v258 = vpack.c.bf16 %v248, %v247
    %v260 = vlaneseq
    %v261 = vshrl.u32 %v260, 7
    %v262 = vsub.s32 0, %v261
    %v263 = vrot.slane %v249, %v262
    %265 = vmatprep.subr.bf16.mxu0 0
    %266 = vmatpush1.bf16.msra.mxu0 %v251
    %267 = vmatprep.subr.bf16.mxu0 0
    %268 = vmatpush1.bf16.msra.mxu0 %v252
    %269 = vmatprep.subr.bf16.mxu0 0
    %270 = vmatpush1.bf16.msra.mxu0 %v253
    %271 = vmatprep.subr.bf16.mxu0 0
    %272 = vmatpush1.bf16.msra.mxu0 %v254
    %273 = vmatprep.subr.bf16.mxu0 0
    %274 = vmatpush1.bf16.msra.mxu0 %v255
    %275 = vmatprep.subr.bf16.mxu0 0
    %276 = vmatpush1.bf16.msra.mxu0 %v256
    %277 = vmatprep.subr.bf16.mxu0 0
    %278 = vmatpush1.bf16.msra.mxu0 %v257
    %279 = vmatprep.subr.bf16.mxu0 0
    %280 = vmatpush1.bf16.msra.mxu0 %v258
    %281 = vmatprep.subr.bf16.mxu0 0
    %282 = vmatpush1.bf16.msra.mxu0 0
    %283 = vmatprep.subr.bf16.mxu0 0
    %284 = vmatpush1.bf16.msra.mxu0 0
    %285 = vmatprep.subr.bf16.mxu0 0
    %286 = vmatpush1.bf16.msra.mxu0 0
    %287 = vmatprep.subr.bf16.mxu0 0
    %288 = vmatpush1.bf16.msra.mxu0 0
    %289 = vmatprep.subr.bf16.mxu0 0
    %290 = vmatpush1.bf16.msra.mxu0 0
    %291 = vmatprep.subr.bf16.mxu0 0
    %292 = vmatpush1.bf16.msra.mxu0 0
    %293 = vmatprep.subr.bf16.mxu0 0
    %294 = vmatpush1.bf16.msra.mxu0 0
    %295 = vmatprep.subr.bf16.mxu0 0
    %296 = vmatpush1.bf16.msra.mxu0 0
    %297 = vmatprep.mubr.bf16.mxu0 0
    %298 = vmatmul.mubr.bf16.gmra.mrb[0].mxu0 %v250
    %v299 = vpop.f32.mrb[0].mxu0
    %v300 = vadd.f32 %v263, %v299
    %v301 = vpop.f32.mrb[0].mxu0
    %v302 = vpop.f32.mrb[0].mxu0
    %v303 = vpop.f32.mrb[0].mxu0
    %304 = vdwg.mxu0
    %305 = vst [vmem:[#allocation10] sm:$0xff] %v300
    // Predicated region
    $region46: #{tpu_custom_call.1} parent=1 // pred_check
      _
    $region47: #{tpu_custom_call.1} parent=1 // pred_check_branch
      %307 = sbr.rel (0) target = $region49
    $region48: #{tpu_custom_call.1} parent=1 // pred_region
      %s309 = ssub.s32 128, 128
      %310 = vsyncadd [#allocation4], %s309
      %s312 = sshll.u32 [#allocation10], 4
      %s313 = int_to_ptr.vmem [resolvable:$true] %s312
      %315 = dma.vmem_to_hbm [thread:$0]  %s313, 128, %s7, [#allocation4]
    $region49: #{tpu_custom_call.1} parent=1 // pred_fallthru
      _
    // Predicated region
    $region50: #{tpu_custom_call.1} parent=1 // pred_check
      _
    $region51: #{tpu_custom_call.1} parent=1 // pred_check_branch
      %317 = sbr.rel (0) target = $region53
    $region52: #{tpu_custom_call.1} parent=1 // pred_region
      %318 = dma.done [#allocation4], 128
    $region53: #{tpu_custom_call.1} parent=1 // pred_fallthru
      _
    %319 = vsyncpa [#allocation3], 1
    %320 = vsyncpa [#allocation6], 1
    %321 = vsyncpa [#allocation9], 1
    %322 = vsyncpa [#allocation4], 1

</llo_original>
